<compile_context>
chip_gen: v6e
topology: v6e:2x2x1
jax: 0.10.0
libtpu: 0.0.40
codegen_flags: <defaults>
</compile_context>

<pallas_src>
import functools

import jax
import jax.numpy as jnp
from jax import lax
from jax.experimental import pallas as pl
from jax.experimental.pallas import tpu as pltpu

LANES = 128
TARGET_BLOCK_BYTES = 2 << 20     # ~2 MiB of lane-padded VMEM per input block


def _round_up(x, m):
    return (x + m - 1) // m * m


def _num_tensorcores():
    """2 on dual-TensorCore chips (v7x); 1 on v5e/v6e and anything unknown."""
    try:
        dev = jax.devices()[0]
        if dev.platform != "tpu":
            return 1
        kind = dev.device_kind.lower()
    except Exception:
        return 1
    return 2 if "v7" in kind else 1


def _log_l1_kernel(p_ref, t_ref, o_ref, acc_ref, *,
                   rows_total, block_rows, blocks_per_core, full_blocks,
                   ragged, ncores):
    if ncores > 1:
        c = pl.program_id(0)          # CORE_PARALLEL axis
        j = pl.program_id(1)          # sequential reduction axis
        last_j = pl.num_programs(1) - 1
    else:
        c = 0
        j = pl.program_id(0)
        last_j = pl.num_programs(0) - 1

    @pl.when(j == 0)
    def _init():
        acc_ref[...] = jnp.zeros_like(acc_ref)

    # Hot path: stream, upcast, one exact divide + one log (EUP), abs (VPU).
    d = jnp.abs(jnp.log(p_ref[...].astype(jnp.float32)
                        / t_ref[...].astype(jnp.float32)))

    sub_tiles = block_rows // 8

    def accumulate(vals):
        # Pure-VPU fold over 8-row sublane-tile slices (free views, no XLU);
        # only the (8, cols) strip does a VMEM read-modify-write.
        folded = vals[0:8, :]
        for s in range(1, sub_tiles):
            folded = folded + vals[s * 8:(s + 1) * 8, :]
        acc_ref[...] += folded

    if ragged:
        logical_block = c * blocks_per_core + j
        is_full = logical_block < full_blocks

        @pl.when(is_full)
        def _full():
            accumulate(d)

        @pl.when(jnp.logical_not(is_full))
        def _partial():
            # Partial boundary block (or fully-masked clamped duplicate):
            # zero out rows at/past the true end of the array.
            limit = rows_total - logical_block * block_rows
            row_ids = lax.broadcasted_iota(jnp.int32, d.shape, 0)
            accumulate(jnp.where(row_ids < limit, d, 0.0))
    else:
        accumulate(d)

    # Epilogue: one cross-lane reduction per core, one lane-dense store.
    @pl.when(j == last_j)
    def _finalize():
        o_ref[...] = jnp.full(o_ref.shape, jnp.sum(acc_ref[...]), jnp.float32)


def log_stft_magnitude_loss(predicts_mag, targets_mag):
    assert predicts_mag.shape == targets_mag.shape
    n = predicts_mag.size

    ncores = _num_tensorcores()

    # Copy-free lane-dense 2D view of the (contiguous) inputs.
    if predicts_mag.ndim == 0:
        rows, cols = 1, 1
    elif n % LANES == 0:
        rows, cols = n // LANES, LANES
    else:
        cols = predicts_mag.shape[-1]
        rows = n // cols

    p2 = predicts_mag.reshape(rows, cols)
    t2 = targets_mag.reshape(rows, cols)

    # Block sizing: ~TARGET_BLOCK_BYTES of lane-padded VMEM per input block,
    # using the real itemsize (bf16 gets 2x the rows per block).
    itemsize = jnp.dtype(predicts_mag.dtype).itemsize
    cols_padded = _round_up(cols, LANES)
    block_rows = max(8, (TARGET_BLOCK_BYTES // (cols_padded * itemsize)) // 8 * 8)
    block_rows = min(block_rows, _round_up(rows, 8))

    # Even per-core split: num_blocks is a multiple of ncores so no block is
    # fetched twice (except degenerate inputs with < 8*ncores valid rows,
    # where the clamped duplicate is fully masked in-kernel).
    num_blocks = _round_up(pl.cdiv(rows, block_rows), ncores)
    block_rows = max(8, _round_up(pl.cdiv(rows, num_blocks), 8))
    blocks_per_core = num_blocks // ncores

    valid_blocks = pl.cdiv(rows, block_rows)   # blocks whose start row < rows
    full_blocks = rows // block_rows           # blocks with no ragged tail
    ragged = full_blocks != num_blocks         # covers partial AND clamped blocks

    def block_index(idx):
        if num_blocks > valid_blocks:
            # Clamp so the DMA never targets a fully out-of-range block; the
            # duplicate is fully masked inside the kernel (ragged is True here).
            idx = jnp.minimum(idx, valid_blocks - 1)
        return idx

    if ncores > 1:
        grid = (ncores, blocks_per_core)
        in_map = lambda c, j: (block_index(c * blocks_per_core + j), 0)
        out_map = lambda c, j: (c, 0, 0)
        dim_sem = (pltpu.CORE_PARALLEL, pltpu.ARBITRARY)
    else:
        grid = (blocks_per_core,)
        in_map = lambda j: (block_index(j), 0)
        out_map = lambda j: (0, 0, 0)
        dim_sem = (pltpu.ARBITRARY,)

    kernel = functools.partial(
        _log_l1_kernel,
        rows_total=rows,
        block_rows=block_rows,
        blocks_per_core=blocks_per_core,
        full_blocks=full_blocks,
        ragged=ragged,
        ncores=ncores,
    )

    cost = pl.CostEstimate(
        flops=3 * n,
        transcendentals=n,
        bytes_accessed=2 * n * itemsize + ncores * 8 * LANES * 4,
    )

    partials = pl.pallas_call(
        kernel,
        out_shape=jax.ShapeDtypeStruct((ncores, 8, LANES), jnp.float32),
        grid_spec=pltpu.PrefetchScalarGridSpec(
            num_scalar_prefetch=0,
            grid=grid,
            in_specs=[
                pl.BlockSpec((block_rows, cols), in_map),
                pl.BlockSpec((block_rows, cols), in_map),
            ],
            out_specs=pl.BlockSpec((1, 8, LANES), out_map),
            scratch_shapes=[pltpu.VMEM((8, cols), jnp.float32)],
        ),
        compiler_params=pltpu.CompilerParams(
            dimension_semantics=dim_sem,
            vmem_limit_bytes=32 * 1024 * 1024,
        ),
        cost_estimate=cost,
    )(p2, t2)

    return partials[:, 0, 0].sum() / n


if __name__ == "__main__":
    key = jax.random.PRNGKey(0)
    k1, k2 = jax.random.split(key)

    # Small STFT-magnitude-like inputs (batch=2, frames=16, freq bins=65);
    # magnitudes must be positive for log().
    shape = (2, 16, 65)
    predicts_mag = jax.random.uniform(k1, shape, jnp.float32, 0.1, 2.0)
    targets_mag = jax.random.uniform(k2, shape, jnp.float32, 0.1, 2.0)

    loss = log_stft_magnitude_loss(predicts_mag, targets_mag)
    jax.block_until_ready(loss)

    # Pure-JAX reference check.
    ref = jnp.mean(jnp.abs(jnp.log(predicts_mag) - jnp.log(targets_mag)))
    assert jnp.allclose(loss, ref, rtol=1e-5, atol=1e-6), (loss, ref)

    print("KERNEL_OK")
</pallas_src>

<mosaic_0001>
module attributes {stable_mosaic.version = 11 : i64} {
  func.func @_log_l1_kernel(%arg0: i32, %arg1: memref<32x65xf32, #tpu.memory_space<vmem>>, %arg2: memref<32x65xf32, #tpu.memory_space<vmem>>, %arg3: memref<1x8x128xf32, #tpu.memory_space<vmem>>, %arg4: memref<8x65xf32, #tpu.memory_space<vmem>>) attributes {dimension_semantics = [#tpu.dimension_semantics<arbitrary>], iteration_bounds = array<i64: 1>, scalar_prefetch = 0 : i64, scratch_operands = 1 : i64, tpu.core_type = #tpu.core_type<tc>, window_params = [{transform_indices = @transform_0, window_bounds = array<i64: 32, 65>}, {transform_indices = @transform_1, window_bounds = array<i64: 32, 65>}, {pipeline_mode = #tpu.pipeline_mode<synchronous>, transform_indices = @transform_2, window_bounds = array<i64: 1, 8, 128>}]} {
    %c0_i32 = arith.constant 0 : i32
    %0 = arith.cmpi eq, %arg0, %c0_i32 : i32
    %1 = arith.extui %0 : i1 to i32
    %c0_i32_0 = arith.constant 0 : i32
    %2 = arith.cmpi ne, %1, %c0_i32_0 : i32
    scf.if %2 {
      %cst = arith.constant 0.000000e+00 : f32
      %21 = vector.broadcast %cst : f32 to vector<8x65xf32>
      %c0_10 = arith.constant 0 : index
      %c0_11 = arith.constant 0 : index
      %22 = vector.load %arg4[%c0_10, %c0_11] : memref<8x65xf32, #tpu.memory_space<vmem>>, vector<8x65xf32>
      tpu.vector_store %arg4[%c0_10, %c0_11], %21 {strides = array<i32>} : memref<8x65xf32, #tpu.memory_space<vmem>>, vector<8x65xf32>,
    } else {
    }
    %c0 = arith.constant 0 : index
    %c0_1 = arith.constant 0 : index
    %3 = vector.load %arg1[%c0, %c0_1] : memref<32x65xf32, #tpu.memory_space<vmem>>, vector<32x65xf32>
    %c0_2 = arith.constant 0 : index
    %c0_3 = arith.constant 0 : index
    %4 = vector.load %arg2[%c0_2, %c0_3] : memref<32x65xf32, #tpu.memory_space<vmem>>, vector<32x65xf32>
    %5 = arith.divf %3, %4 : vector<32x65xf32>
    %6 = math.log %5 : vector<32x65xf32>
    %7 = math.absf %6 : vector<32x65xf32>
    %8 = vector.extract_strided_slice %7 {offsets = [0, 0], sizes = [8, 65], strides = [1, 1]} : vector<32x65xf32> to vector<8x65xf32>
    %9 = vector.extract_strided_slice %7 {offsets = [8, 0], sizes = [8, 65], strides = [1, 1]} : vector<32x65xf32> to vector<8x65xf32>
    %10 = arith.addf %8, %9 : vector<8x65xf32>
    %11 = vector.extract_strided_slice %7 {offsets = [16, 0], sizes = [8, 65], strides = [1, 1]} : vector<32x65xf32> to vector<8x65xf32>
    %12 = arith.addf %10, %11 : vector<8x65xf32>
    %13 = vector.extract_strided_slice %7 {offsets = [24, 0], sizes = [8, 65], strides = [1, 1]} : vector<32x65xf32> to vector<8x65xf32>
    %14 = arith.addf %12, %13 : vector<8x65xf32>
    %c0_4 = arith.constant 0 : index
    %c0_5 = arith.constant 0 : index
    %15 = vector.load %arg4[%c0_4, %c0_5] : memref<8x65xf32, #tpu.memory_space<vmem>>, vector<8x65xf32>
    %16 = arith.addf %15, %14 : vector<8x65xf32>
    %c0_6 = arith.constant 0 : index
    %c0_7 = arith.constant 0 : index
    %17 = vector.load %arg4[%c0_6, %c0_7] : memref<8x65xf32, #tpu.memory_space<vmem>>, vector<8x65xf32>
    tpu.vector_store %arg4[%c0_6, %c0_7], %16 {strides = array<i32>} : memref<8x65xf32, #tpu.memory_space<vmem>>, vector<8x65xf32>,
    %c0_i32_8 = arith.constant 0 : i32
    %18 = arith.cmpi eq, %arg0, %c0_i32_8 : i32
    %19 = arith.extui %18 : i1 to i32
    %c0_i32_9 = arith.constant 0 : i32
    %20 = arith.cmpi ne, %19, %c0_i32_9 : i32
    scf.if %20 {
      %c0_10 = arith.constant 0 : index
      %c0_11 = arith.constant 0 : index
      %21 = vector.load %arg4[%c0_10, %c0_11] : memref<8x65xf32, #tpu.memory_space<vmem>>, vector<8x65xf32>
      %22 = vector.shape_cast %21 : vector<8x65xf32> to vector<1x8x65xf32>
      %cst = arith.constant dense<0.000000e+00> : vector<1xf32>
      %23 = vector.multi_reduction <add>, %22, %cst [1, 2] : vector<1x8x65xf32> to vector<1xf32>
      %24 = vector.shape_cast %23 : vector<1xf32> to vector<1x1x1xf32>
      %25 = vector.extract %24[0, 0, 0] : f32 from vector<1x1x1xf32>
      %26 = vector.broadcast %25 : f32 to vector<1x8x128xf32>
      %c0_12 = arith.constant 0 : index
      %c0_13 = arith.constant 0 : index
      %c0_14 = arith.constant 0 : index
      %27 = vector.load %arg3[%c0_12, %c0_13, %c0_14] : memref<1x8x128xf32, #tpu.memory_space<vmem>>, vector<1x8x128xf32>
      tpu.vector_store %arg3[%c0_12, %c0_13, %c0_14], %26 {strides = array<i32>} : memref<1x8x128xf32, #tpu.memory_space<vmem>>, vector<1x8x128xf32>,
    } else {
    }
    return
  }
  func.func @transform_0(%arg0: i32) -> (i32, i32) {
    %c0_i32 = arith.constant 0 : i32
    %c0_i32_0 = arith.constant 0 : i32
    return %arg0, %c0_i32 : i32, i32
  }
  func.func @transform_1(%arg0: i32) -> (i32, i32) {
    %c0_i32 = arith.constant 0 : i32
    %c0_i32_0 = arith.constant 0 : i32
    return %arg0, %c0_i32 : i32, i32
  }
  func.func @transform_2(%arg0: i32) -> (i32, i32, i32) {
    %c0_i32 = arith.constant 0 : i32
    %c0_i32_0 = arith.constant 0 : i32
    %c0_i32_1 = arith.constant 0 : i32
    %c0_i32_2 = arith.constant 0 : i32
    return %c0_i32, %c0_i32_0, %c0_i32_1 : i32, i32, i32
  }
}

</mosaic_0001>

<llo_original>
// kernel: tpu_custom_call.1
$region0: #{tpu_custom_call.1}
  #allocation0 [shape = 'u32[]', space=smem, size = 0x4, offset = 0x4, fixed_abs, tag = 'smem constant byte address 0x4 - core index']
  #allocation1 [shape = 'u32[144,128]{1,0:T(1,128)}', space=vmem, size = 0x12000, scoped, tag = 'internal scratch']
  #allocation2 [shape = 'f32[8,65]{1,0:T(8,128)}', space=vmem, size = 0x1000, scoped, tag = 'scratch operand']
  %s0 = inlined_call_operand.hbm [shape: f32[32,65], index: 0, kind: input, shape index: {}]
  %s1 = inlined_call_operand.hbm [shape: f32[32,65], index: 1, kind: input, shape index: {}]
  %s2 = inlined_call_operand.hbm [shape: f32[1,8,128], index: 2, kind: output, shape index: {}]
  %s3 = sld [smem:[#allocation0]]
  $region34: #{tpu_custom_call.1} parent=0
    _
  %s5 = ssub.s32 1, %s3
  %s6 = scalar_select 0, %s5, %s3
  $region1: #{tpu_custom_call.1} parent=0
    #allocation3 [shape = 'u8[16384]{0}', space=vmem, size = 0x4000, scoped, tag = 'input window, operand 0, single buffered']
    #allocation4 [shape = 's32[1]{0}', space=sflag, size = 0x4, scoped, tag = 'scoped memory for tpu_custom_call.1']
    #allocation5 [shape = 's32[1]{0}', space=sflag, size = 0x4, scoped, tag = 'scoped memory for tpu_custom_call.1']
    #allocation6 [shape = 'u8[16384]{0}', space=vmem, size = 0x4000, scoped, tag = 'input window, operand 1, single buffered']
    #allocation7 [shape = 's32[1]{0}', space=sflag, size = 0x4, scoped, tag = 'scoped memory for tpu_custom_call.1']
    #allocation8 [shape = 'u8[4096]{0}', space=vmem, size = 0x1000, scoped, tag = 'output window, operand 0, single buffered']
    %7 = vsyncpa [#allocation4], 0
    %8 = vsyncpa [#allocation7], 0
    %9 = vsyncpa [#allocation5], 0
    // Predicated region
    $region2: #{tpu_custom_call.1} parent=1 // pred_check
      _
    $region3: #{tpu_custom_call.1} parent=1 // pred_check_branch
      %11 = sbr.rel (0) target = $region5
    $region4: #{tpu_custom_call.1} parent=1 // pred_region
      %s13 = ssub.s32 512, 512
      %14 = vsyncadd [#allocation4], %s13
      %s15 = sshll.u32 [#allocation3], 4
      %s16 = int_to_ptr.vmem [resolvable:$true] %s15
      %21 = dma.hbm_to_vmem [thread:$0]  %s0, 512, %s16, [#allocation4], 128, 128, 8
    $region5: #{tpu_custom_call.1} parent=1 // pred_fallthru
      _
    // Predicated region
    $region6: #{tpu_custom_call.1} parent=1 // pred_check
      _
    $region7: #{tpu_custom_call.1} parent=1 // pred_check_branch
      %23 = sbr.rel (0) target = $region9
    $region8: #{tpu_custom_call.1} parent=1 // pred_region
      %s25 = ssub.s32 512, 512
      %26 = vsyncadd [#allocation7], %s25
      %s27 = sshll.u32 [#allocation6], 4
      %s28 = int_to_ptr.vmem [resolvable:$true] %s27
      %33 = dma.hbm_to_vmem [thread:$0]  %s1, 512, %s28, [#allocation7], 128, 128, 8
    $region9: #{tpu_custom_call.1} parent=1 // pred_fallthru
      _
    // Predicated region
    $region10: #{tpu_custom_call.1} parent=1 // pred_check
      _
    $region11: #{tpu_custom_call.1} parent=1 // pred_check_branch
      %35 = sbr.rel (0) target = $region13
    $region12: #{tpu_custom_call.1} parent=1 // pred_region
      %36 = dma.done [#allocation4], 512
    $region13: #{tpu_custom_call.1} parent=1 // pred_fallthru
      _
    // Predicated region
    $region14: #{tpu_custom_call.1} parent=1 // pred_check
      _
    $region15: #{tpu_custom_call.1} parent=1 // pred_check_branch
      %38 = sbr.rel (0) target = $region17
    $region16: #{tpu_custom_call.1} parent=1 // pred_region
      %39 = dma.done [#allocation7], 512
    $region17: #{tpu_custom_call.1} parent=1 // pred_fallthru
      _
    %p40 = scmp.eq.s32.totalorder 0, 0
    // Predicated region
    $region18: #{tpu_custom_call.1} parent=1 // pred_check
      %p41 = pneg %p40
    $region19: #{tpu_custom_call.1} parent=1 // pred_check_branch
      %43 = sbr.rel (%p41) target = $region21
    $region20: #{tpu_custom_call.1} parent=1 // pred_region
      %vm44 = vcmask 531456
      %45 = vst.msk [vmem:[#allocation2] sm:$0xff] %vm44, 0.0
    $region21: #{tpu_custom_call.1} parent=1 // pred_fallthru
      _
    %v46 = vld [vmem:[#allocation3] sm:$0xff]
    %v47 = vld [vmem:[#allocation3 + $0x8] sm:$0xff]
    %v48 = vld [vmem:[#allocation3 + $0x10] sm:$0xff]
    %v49 = vld [vmem:[#allocation3 + $0x18] sm:$0xff]
    %v50 = vld [vmem:[#allocation6] sm:$0xff]
    %v51 = vld [vmem:[#allocation6 + $0x8] sm:$0xff]
    %v52 = vld [vmem:[#allocation6 + $0x10] sm:$0xff]
    %v53 = vld [vmem:[#allocation6 + $0x18] sm:$0xff]
    %v54 = vrcp.pop %v50
    %v55 = vmul.f32 %v46, %v54
    %v56 = vrcp.pop %v51
    %v57 = vmul.f32 %v47, %v56
    %v58 = vrcp.pop %v52
    %v59 = vmul.f32 %v48, %v58
    %v60 = vrcp.pop %v53
    %v61 = vmul.f32 %v49, %v60
    %v62 = vlog2.pop %v55
    %v63 = vmul.f32 %v62, 0.6931472
    %v64 = vlog2.pop %v57
    %v65 = vmul.f32 %v64, 0.6931472
    %v66 = vlog2.pop %v59
    %v67 = vmul.f32 %v66, 0.6931472
    %v68 = vlog2.pop %v61
    %v69 = vmul.f32 %v68, 0.6931472
    %v70 = vand.u32 2147483647, %v63
    %v71 = vand.u32 2147483647, %v65
    %v72 = vand.u32 2147483647, %v67
    %v73 = vand.u32 2147483647, %v69
    %v74 = vadd.f32 %v70, %v71
    %v75 = vadd.f32 %v74, %v72
    %v76 = vadd.f32 %v75, %v73
    %v77 = vld [vmem:[#allocation2] sm:$0xff]
    %v78 = vadd.f32 %v77, %v76
    %vm79 = vcmask 531456
    %80 = vst.msk [vmem:[#allocation2] sm:$0xff] %vm79, %v78
    // Predicated region
    $region22: #{tpu_custom_call.1} parent=1 // pred_check
      %p81 = pneg %p40
    $region23: #{tpu_custom_call.1} parent=1 // pred_check_branch
      %83 = sbr.rel (%p81) target = $region25
    $region24: #{tpu_custom_call.1} parent=1 // pred_region
      %v84 = vld [vmem:[#allocation2] sm:$0xff]
      %v85 = vsel %vm79, %v84, 0.0
      %86 = vadd.xlane.f32.xlu0 %v85
      %v87 = vpop.xlane.xlu0 %86
      %v88 = vrot.slane %v87, 4
      %v89 = vadd.f32 %v87, %v88
      %v90 = vrot.slane %v89, 2
      %v91 = vadd.f32 %v89, %v90
      %v92 = vrot.slane %v91, 1
      %v93 = vadd.f32 %v91, %v92
      %s94 = vtos %v93
      %v95 = vstv %s94
      %96 = vst [vmem:[#allocation8] sm:$0xff] %v95
    $region25: #{tpu_custom_call.1} parent=1 // pred_fallthru
      _
    // Predicated region
    $region26: #{tpu_custom_call.1} parent=1 // pred_check
      _
    $region27: #{tpu_custom_call.1} parent=1 // pred_check_branch
      %98 = sbr.rel (0) target = $region29
    $region28: #{tpu_custom_call.1} parent=1 // pred_region
      %s100 = ssub.s32 128, 128
      %101 = vsyncadd [#allocation5], %s100
      %s103 = sshll.u32 [#allocation8], 4
      %s104 = int_to_ptr.vmem [resolvable:$true] %s103
      %106 = dma.vmem_to_hbm [thread:$0]  %s104, 128, %s2, [#allocation5]
    $region29: #{tpu_custom_call.1} parent=1 // pred_fallthru
      _
    // Predicated region
    $region30: #{tpu_custom_call.1} parent=1 // pred_check
      _
    $region31: #{tpu_custom_call.1} parent=1 // pred_check_branch
      %108 = sbr.rel (0) target = $region33
    $region32: #{tpu_custom_call.1} parent=1 // pred_region
      %109 = dma.done [#allocation5], 128
    $region33: #{tpu_custom_call.1} parent=1 // pred_fallthru
      _
    %110 = vsyncpa [#allocation4], 1
    %111 = vsyncpa [#allocation7], 1
    %112 = vsyncpa [#allocation5], 1

</llo_original>
